<compile_context>
chip_gen: v7x
topology: tpu7x:2x2x1
jax: 0.10.0
libtpu: 0.0.40
codegen_flags: <defaults>
</compile_context>

<pallas_src>
import functools

import jax
import jax.numpy as jnp
from jax import lax
from jax.experimental import pallas as pl
from jax.experimental.pallas import tpu as pltpu


def _round_up(n, m):
    return ((n + m - 1) // m) * m


def gru_net_kernel(x_ref, h0_ref, w_ref, scal_ref, out_ref, gi_ref, *,
                   hidden, seq_len, batch, feat_rows, scal_row, lanes):
    """Single-kernel GRU(1 layer) -> Linear(H,1) -> PReLU forward.

    Shapes (Bp = padded batch, L = roundup(3H,128), FR = roundup(F,8)):
      x_ref:   (S*Bp, FR)  VMEM  time-major, flattened, feature-padded
      h0_ref:  (Bp, H)     VMEM
      w_ref:   (R, L)      VMEM  ONE packed parameter buffer:
                             rows [0, FR)      : W_ih^T (gates packed in lanes [0,3H))
                             rows [FR, FR+H)   : W_hh^T
                             row  scal_row     : b_ih (+ b_hh folded for r/z gates)
                             row  scal_row + 1 : b_hn  in lanes [0, H)
                             row  scal_row + 2 : w_fc  in lanes [0, H)
      scal_ref:(2,)        SMEM  [fc bias, PReLU slope]
      out_ref: (Bp, L)     VMEM  lane-dense; result broadcast across lanes
      gi_ref:  (S*Bp, L)   VMEM  scratch: hoisted input projection
    """
    H, Bp, FR, L = hidden, batch, feat_rows, lanes

    # ---- hoisted input projection: ONE MXU call for all timesteps ----------
    gi_ref[...] = (jnp.dot(x_ref[...], w_ref[0:FR, :],
                           preferred_element_type=jnp.float32)
                   + w_ref[scal_row:scal_row + 1, :])

    # ---- loop invariants: loaded / broadcast exactly once -------------------
    whh = w_ref[FR:FR + H, :]                                          # (H, L)
    bhn = jnp.broadcast_to(w_ref[scal_row + 1:scal_row + 2, 0:H], (Bp, H))
    wfc = jnp.broadcast_to(w_ref[scal_row + 2:scal_row + 3, 0:H], (Bp, H))

    def gru_step(gi, h):
        # Serial chain: ONE MXU column pass (packed gates fit <=128 lanes).
        gh = jnp.dot(h, whh, preferred_element_type=jnp.float32)      # (Bp, L)
        # One fused sigmoid over the whole packed vreg; r/z are lane sub-slices.
        sg = jax.nn.sigmoid(gi + gh)
        r = sg[:, 0:H]
        z = sg[:, H:2 * H]
        # PyTorch GRU: n = tanh(W_in x + b_in + r * (W_hn h + b_hn))
        n = jnp.tanh(gi[:, 2 * H:3 * H] + r * (gh[:, 2 * H:3 * H] + bhn))
        return (1.0 - z) * n + z * h

    h = h0_ref[...]                                                    # (Bp, H)
    if seq_len <= 32:
        # Small static S: full unroll -> constant offsets, maximum pipelining.
        for t in range(seq_len):
            h = gru_step(gi_ref[t * Bp:(t + 1) * Bp, :], h)
    else:
        # Large S: bound live ranges; modest unroll keeps MXU/EUP pipelined.
        def body(t, h):
            start = pl.multiple_of(t * Bp, 8)
            return gru_step(gi_ref[pl.ds(start, Bp), :], h)
        h = lax.fori_loop(0, seq_len, body, h, unroll=4)

    # ---- fully_connected: Linear(H, 1) + PReLU on VPU/XLU (no MXU pass) -----
    fc = jnp.sum(h * wfc, axis=-1, keepdims=True) + scal_ref[0]        # (Bp, 1)
    a = scal_ref[1]
    fc = jnp.where(fc >= 0.0, fc, a * fc)
    # Lane-dense (unmasked) store; wrapper slices lane 0.
    out_ref[...] = jnp.broadcast_to(fc, (Bp, L)).astype(out_ref.dtype)


def rnn_net_forward(x, hidden, params):
    """x: (B, S, F) batch_first; hidden: (num_layers*dirs=1, B, H)."""
    B, S, F = x.shape
    H = params["w_hh"].shape[1]
    f32 = jnp.float32

    Bp = _round_up(B, 8)              # pad batch to full sublane groups
    FR = _round_up(F, 8)              # W_ih rows in the packed buffer
    L = _round_up(3 * H, 128)         # packed gates r|z|n contiguous in lanes
    scal_row = FR + H                 # H is a multiple of 8 -> aligned slices
    R = _round_up(scal_row + 3, 8)

    # ---- activations ---------------------------------------------------------
    x_sbf = jnp.transpose(x.astype(f32), (1, 0, 2))                    # (S,B,F)
    x_pad = jnp.zeros((S, Bp, FR), f32).at[:, :B, :F].set(x_sbf)
    x_flat = x_pad.reshape(S * Bp, FR)                                 # (S*Bp,FR)
    h0 = jnp.zeros((Bp, H), f32).at[:B, :].set(hidden[0].astype(f32))

    # ---- ONE packed parameter buffer (fewer tiny input DMAs) -----------------
    b_ih = params["b_ih"].astype(f32)
    b_hh = params["b_hh"].astype(f32)
    # Fold b_hh into the hoisted bias for r/z only; b_hn must stay inside the
    # loop because the n gate needs r * (W_hn h + b_hn).
    b_fold = jnp.concatenate([b_ih[0:2 * H] + b_hh[0:2 * H], b_ih[2 * H:3 * H]])

    W = jnp.zeros((R, L), f32)
    W = W.at[0:F, 0:3 * H].set(params["w_ih"].astype(f32).T)           # (F, 3H)
    W = W.at[FR:FR + H, 0:3 * H].set(params["w_hh"].astype(f32).T)     # (H, 3H)
    W = W.at[scal_row, 0:3 * H].set(b_fold)
    W = W.at[scal_row + 1, 0:H].set(b_hh[2 * H:3 * H])                 # b_hn
    W = W.at[scal_row + 2, 0:H].set(params["w_fc"].astype(f32)[0])     # fc row

    scal = jnp.array([params["b_fc"][0], params["prelu"][0]], f32)     # SMEM

    kernel = functools.partial(
        gru_net_kernel, hidden=H, seq_len=S, batch=Bp, feat_rows=FR,
        scal_row=scal_row, lanes=L)
    vmem = pl.BlockSpec(memory_space=pltpu.MemorySpace.VMEM)
    smem = pl.BlockSpec(memory_space=pltpu.MemorySpace.SMEM)

    # TODO(synk): for large workloads, add a grid over independent batch tiles
    # with dimension_semantics=("parallel",) (uses both v7x TensorCores) and
    # chunk the hoisted gi scratch over time so it stays inside v7x's 64 MiB VMEM.
    out_pad = pl.pallas_call(
        kernel,
        out_shape=jax.ShapeDtypeStruct((Bp, L), f32),
        in_specs=[vmem, vmem, vmem, smem],
        out_specs=vmem,
        scratch_shapes=[pltpu.VMEM((S * Bp, L), f32)],
        compiler_params=pltpu.CompilerParams(vmem_limit_bytes=32 * 1024 * 1024),
    )(x_flat, h0, W, scal)
    return out_pad[:B, 0:1]


def reference_forward(x, hidden, params):
    """Pure-JAX reference of the PyTorch module's math (unfolded)."""
    B, S, F = x.shape
    H = params["w_hh"].shape[1]
    h = hidden[0].astype(jnp.float32)
    wih_t = params["w_ih"].T
    whh_t = params["w_hh"].T
    for t in range(S):
        x_t = x[:, t, :].astype(jnp.float32)
        gi = x_t @ wih_t + params["b_ih"]
        gh = h @ whh_t + params["b_hh"]
        r = jax.nn.sigmoid(gi[:, 0:H] + gh[:, 0:H])
        z = jax.nn.sigmoid(gi[:, H:2 * H] + gh[:, H:2 * H])
        n = jnp.tanh(gi[:, 2 * H:3 * H] + r * gh[:, 2 * H:3 * H])
        h = (1.0 - z) * n + z * h
    out = h @ params["w_fc"].T + params["b_fc"]
    a = params["prelu"][0]
    return jnp.where(out >= 0.0, out, a * out)


def init_params(key, num_features, num_hidden):
    """Deterministic synthetic init matching PyTorch GRU/Linear/PReLU shapes."""
    H, F = num_hidden, num_features
    k = 1.0 / jnp.sqrt(jnp.float32(H))
    keys = jax.random.split(key, 7)
    u = lambda kk, shape: jax.random.uniform(kk, shape, jnp.float32, -k, k)
    return {
        "w_ih": u(keys[0], (3 * H, F)),   # weight_ih_l0
        "w_hh": u(keys[1], (3 * H, H)),   # weight_hh_l0
        "b_ih": u(keys[2], (3 * H,)),     # bias_ih_l0
        "b_hh": u(keys[3], (3 * H,)),     # bias_hh_l0
        "w_fc": u(keys[4], (1, H)),       # fully_connected.weight
        "b_fc": u(keys[5], (1,)),         # fully_connected.bias
        "prelu": jnp.array([0.25], jnp.float32),  # nn.PReLU() default
    }


if __name__ == "__main__":
    # Small shapes consistent with the module: batch=2, seq=8, features=4, hidden=32
    B, S, F, H = 2, 8, 4, 32

    key = jax.random.PRNGKey(0)
    k_x, k_p = jax.random.split(key)
    x = jax.random.normal(k_x, (B, S, F), jnp.float32)
    hidden = jnp.zeros((1, B, H), jnp.float32)  # init_hidden(batch_size)
    params = init_params(k_p, F, H)

    out = rnn_net_forward(x, hidden, params)
    out = jax.block_until_ready(out)

    ref = reference_forward(x, hidden, params)
    assert out.shape == (B, 1)
    assert jnp.allclose(out, ref, atol=1e-4, rtol=1e-4), (out, ref)

    print("KERNEL_OK")
</pallas_src>

<mosaic_0001>
module attributes {stable_mosaic.version = 11 : i64} {
  func.func @gru_net_kernel(%arg0: memref<64x8xf32, #tpu.memory_space<vmem>>, %arg1: memref<8x32xf32, #tpu.memory_space<vmem>>, %arg2: memref<48x128xf32, #tpu.memory_space<vmem>>, %arg3: memref<2xf32, #tpu.memory_space<smem>>, %arg4: memref<8x128xf32, #tpu.memory_space<vmem>>, %arg5: memref<64x128xf32, #tpu.memory_space<vmem>>) attributes {dimension_semantics = [], scalar_prefetch = 0 : i64, scratch_operands = 1 : i64, tpu.core_type = #tpu.core_type<tc>} {
    %c0 = arith.constant 0 : index
    %c0_0 = arith.constant 0 : index
    %0 = vector.load %arg0[%c0, %c0_0] : memref<64x8xf32, #tpu.memory_space<vmem>>, vector<64x8xf32>
    %c0_1 = arith.constant 0 : index
    %c0_2 = arith.constant 0 : index
    %1 = vector.load %arg2[%c0_1, %c0_2] : memref<48x128xf32, #tpu.memory_space<vmem>>, vector<8x128xf32>
    %cst = arith.constant dense<0.000000e+00> : vector<64x128xf32>
    %2 = tpu.matmul %0, %1, %cst {dimension_numbers = #tpu.dot_dimension_numbers<[1], [0], [0], [1], [0, 0, 1, 1], [], []>} : vector<64x8xf32>, vector<8x128xf32>, vector<64x128xf32> -> vector<64x128xf32>
    %c40 = arith.constant 40 : index
    %c0_3 = arith.constant 0 : index
    %3 = vector.load %arg2[%c40, %c0_3] : memref<48x128xf32, #tpu.memory_space<vmem>>, vector<1x128xf32>
    %4 = vector.broadcast %3 : vector<1x128xf32> to vector<64x128xf32>
    %5 = arith.addf %2, %4 : vector<64x128xf32>
    %c0_4 = arith.constant 0 : index
    %c0_5 = arith.constant 0 : index
    %6 = vector.load %arg5[%c0_4, %c0_5] : memref<64x128xf32, #tpu.memory_space<vmem>>, vector<64x128xf32>
    tpu.vector_store %arg5[%c0_4, %c0_5], %5 {strides = array<i32>} : memref<64x128xf32, #tpu.memory_space<vmem>>, vector<64x128xf32>,
    %c8 = arith.constant 8 : index
    %c0_6 = arith.constant 0 : index
    %7 = vector.load %arg2[%c8, %c0_6] : memref<48x128xf32, #tpu.memory_space<vmem>>, vector<32x128xf32>
    %c41 = arith.constant 41 : index
    %c0_7 = arith.constant 0 : index
    %8 = vector.load %arg2[%c41, %c0_7] : memref<48x128xf32, #tpu.memory_space<vmem>>, vector<1x32xf32>
    %9 = vector.shape_cast %8 : vector<1x32xf32> to vector<1x32xf32>
    %10 = vector.broadcast %9 : vector<1x32xf32> to vector<8x32xf32>
    %c42 = arith.constant 42 : index
    %c0_8 = arith.constant 0 : index
    %11 = vector.load %arg2[%c42, %c0_8] : memref<48x128xf32, #tpu.memory_space<vmem>>, vector<1x32xf32>
    %12 = vector.shape_cast %11 : vector<1x32xf32> to vector<1x32xf32>
    %13 = vector.broadcast %12 : vector<1x32xf32> to vector<8x32xf32>
    %c0_9 = arith.constant 0 : index
    %c0_10 = arith.constant 0 : index
    %14 = vector.load %arg1[%c0_9, %c0_10] : memref<8x32xf32, #tpu.memory_space<vmem>>, vector<8x32xf32>
    %c0_11 = arith.constant 0 : index
    %c0_12 = arith.constant 0 : index
    %15 = vector.load %arg5[%c0_11, %c0_12] : memref<64x128xf32, #tpu.memory_space<vmem>>, vector<8x128xf32>
    %cst_13 = arith.constant dense<0.000000e+00> : vector<8x128xf32>
    %16 = tpu.matmul %14, %7, %cst_13 {dimension_numbers = #tpu.dot_dimension_numbers<[1], [0], [0], [1], [0, 0, 1, 1], [], []>} : vector<8x32xf32>, vector<32x128xf32>, vector<8x128xf32> -> vector<8x128xf32>
    %17 = arith.addf %15, %16 : vector<8x128xf32>
    %18 = arith.negf %17 : vector<8x128xf32>
    %19 = math.exp %18 : vector<8x128xf32>
    %cst_14 = arith.constant 1.000000e+00 : f32
    %20 = vector.broadcast %cst_14 : f32 to vector<8x128xf32>
    %21 = arith.addf %20, %19 : vector<8x128xf32>
    %22 = arith.divf %20, %21 : vector<8x128xf32>
    %23 = vector.extract_strided_slice %22 {offsets = [0, 0], sizes = [8, 32], strides = [1, 1]} : vector<8x128xf32> to vector<8x32xf32>
    %24 = vector.extract_strided_slice %22 {offsets = [0, 32], sizes = [8, 32], strides = [1, 1]} : vector<8x128xf32> to vector<8x32xf32>
    %25 = vector.extract_strided_slice %15 {offsets = [0, 64], sizes = [8, 32], strides = [1, 1]} : vector<8x128xf32> to vector<8x32xf32>
    %26 = vector.extract_strided_slice %16 {offsets = [0, 64], sizes = [8, 32], strides = [1, 1]} : vector<8x128xf32> to vector<8x32xf32>
    %27 = arith.addf %26, %10 : vector<8x32xf32>
    %28 = arith.mulf %23, %27 : vector<8x32xf32>
    %29 = arith.addf %25, %28 : vector<8x32xf32>
    %30 = math.tanh %29 : vector<8x32xf32>
    %cst_15 = arith.constant 1.000000e+00 : f32
    %31 = vector.broadcast %cst_15 : f32 to vector<8x32xf32>
    %32 = arith.subf %31, %24 : vector<8x32xf32>
    %33 = arith.mulf %32, %30 : vector<8x32xf32>
    %34 = arith.mulf %24, %14 : vector<8x32xf32>
    %35 = arith.addf %33, %34 : vector<8x32xf32>
    %c8_16 = arith.constant 8 : index
    %c0_17 = arith.constant 0 : index
    %36 = vector.load %arg5[%c8_16, %c0_17] : memref<64x128xf32, #tpu.memory_space<vmem>>, vector<8x128xf32>
    %cst_18 = arith.constant dense<0.000000e+00> : vector<8x128xf32>
    %37 = tpu.matmul %35, %7, %cst_18 {dimension_numbers = #tpu.dot_dimension_numbers<[1], [0], [0], [1], [0, 0, 1, 1], [], []>} : vector<8x32xf32>, vector<32x128xf32>, vector<8x128xf32> -> vector<8x128xf32>
    %38 = arith.addf %36, %37 : vector<8x128xf32>
    %39 = arith.negf %38 : vector<8x128xf32>
    %40 = math.exp %39 : vector<8x128xf32>
    %cst_19 = arith.constant 1.000000e+00 : f32
    %41 = vector.broadcast %cst_19 : f32 to vector<8x128xf32>
    %42 = arith.addf %41, %40 : vector<8x128xf32>
    %43 = arith.divf %41, %42 : vector<8x128xf32>
    %44 = vector.extract_strided_slice %43 {offsets = [0, 0], sizes = [8, 32], strides = [1, 1]} : vector<8x128xf32> to vector<8x32xf32>
    %45 = vector.extract_strided_slice %43 {offsets = [0, 32], sizes = [8, 32], strides = [1, 1]} : vector<8x128xf32> to vector<8x32xf32>
    %46 = vector.extract_strided_slice %36 {offsets = [0, 64], sizes = [8, 32], strides = [1, 1]} : vector<8x128xf32> to vector<8x32xf32>
    %47 = vector.extract_strided_slice %37 {offsets = [0, 64], sizes = [8, 32], strides = [1, 1]} : vector<8x128xf32> to vector<8x32xf32>
    %48 = arith.addf %47, %10 : vector<8x32xf32>
    %49 = arith.mulf %44, %48 : vector<8x32xf32>
    %50 = arith.addf %46, %49 : vector<8x32xf32>
    %51 = math.tanh %50 : vector<8x32xf32>
    %cst_20 = arith.constant 1.000000e+00 : f32
    %52 = vector.broadcast %cst_20 : f32 to vector<8x32xf32>
    %53 = arith.subf %52, %45 : vector<8x32xf32>
    %54 = arith.mulf %53, %51 : vector<8x32xf32>
    %55 = arith.mulf %45, %35 : vector<8x32xf32>
    %56 = arith.addf %54, %55 : vector<8x32xf32>
    %c16 = arith.constant 16 : index
    %c0_21 = arith.constant 0 : index
    %57 = vector.load %arg5[%c16, %c0_21] : memref<64x128xf32, #tpu.memory_space<vmem>>, vector<8x128xf32>
    %cst_22 = arith.constant dense<0.000000e+00> : vector<8x128xf32>
    %58 = tpu.matmul %56, %7, %cst_22 {dimension_numbers = #tpu.dot_dimension_numbers<[1], [0], [0], [1], [0, 0, 1, 1], [], []>} : vector<8x32xf32>, vector<32x128xf32>, vector<8x128xf32> -> vector<8x128xf32>
    %59 = arith.addf %57, %58 : vector<8x128xf32>
    %60 = arith.negf %59 : vector<8x128xf32>
    %61 = math.exp %60 : vector<8x128xf32>
    %cst_23 = arith.constant 1.000000e+00 : f32
    %62 = vector.broadcast %cst_23 : f32 to vector<8x128xf32>
    %63 = arith.addf %62, %61 : vector<8x128xf32>
    %64 = arith.divf %62, %63 : vector<8x128xf32>
    %65 = vector.extract_strided_slice %64 {offsets = [0, 0], sizes = [8, 32], strides = [1, 1]} : vector<8x128xf32> to vector<8x32xf32>
    %66 = vector.extract_strided_slice %64 {offsets = [0, 32], sizes = [8, 32], strides = [1, 1]} : vector<8x128xf32> to vector<8x32xf32>
    %67 = vector.extract_strided_slice %57 {offsets = [0, 64], sizes = [8, 32], strides = [1, 1]} : vector<8x128xf32> to vector<8x32xf32>
    %68 = vector.extract_strided_slice %58 {offsets = [0, 64], sizes = [8, 32], strides = [1, 1]} : vector<8x128xf32> to vector<8x32xf32>
    %69 = arith.addf %68, %10 : vector<8x32xf32>
    %70 = arith.mulf %65, %69 : vector<8x32xf32>
    %71 = arith.addf %67, %70 : vector<8x32xf32>
    %72 = math.tanh %71 : vector<8x32xf32>
    %cst_24 = arith.constant 1.000000e+00 : f32
    %73 = vector.broadcast %cst_24 : f32 to vector<8x32xf32>
    %74 = arith.subf %73, %66 : vector<8x32xf32>
    %75 = arith.mulf %74, %72 : vector<8x32xf32>
    %76 = arith.mulf %66, %56 : vector<8x32xf32>
    %77 = arith.addf %75, %76 : vector<8x32xf32>
    %c24 = arith.constant 24 : index
    %c0_25 = arith.constant 0 : index
    %78 = vector.load %arg5[%c24, %c0_25] : memref<64x128xf32, #tpu.memory_space<vmem>>, vector<8x128xf32>
    %cst_26 = arith.constant dense<0.000000e+00> : vector<8x128xf32>
    %79 = tpu.matmul %77, %7, %cst_26 {dimension_numbers = #tpu.dot_dimension_numbers<[1], [0], [0], [1], [0, 0, 1, 1], [], []>} : vector<8x32xf32>, vector<32x128xf32>, vector<8x128xf32> -> vector<8x128xf32>
    %80 = arith.addf %78, %79 : vector<8x128xf32>
    %81 = arith.negf %80 : vector<8x128xf32>
    %82 = math.exp %81 : vector<8x128xf32>
    %cst_27 = arith.constant 1.000000e+00 : f32
    %83 = vector.broadcast %cst_27 : f32 to vector<8x128xf32>
    %84 = arith.addf %83, %82 : vector<8x128xf32>
    %85 = arith.divf %83, %84 : vector<8x128xf32>
    %86 = vector.extract_strided_slice %85 {offsets = [0, 0], sizes = [8, 32], strides = [1, 1]} : vector<8x128xf32> to vector<8x32xf32>
    %87 = vector.extract_strided_slice %85 {offsets = [0, 32], sizes = [8, 32], strides = [1, 1]} : vector<8x128xf32> to vector<8x32xf32>
    %88 = vector.extract_strided_slice %78 {offsets = [0, 64], sizes = [8, 32], strides = [1, 1]} : vector<8x128xf32> to vector<8x32xf32>
    %89 = vector.extract_strided_slice %79 {offsets = [0, 64], sizes = [8, 32], strides = [1, 1]} : vector<8x128xf32> to vector<8x32xf32>
    %90 = arith.addf %89, %10 : vector<8x32xf32>
    %91 = arith.mulf %86, %90 : vector<8x32xf32>
    %92 = arith.addf %88, %91 : vector<8x32xf32>
    %93 = math.tanh %92 : vector<8x32xf32>
    %cst_28 = arith.constant 1.000000e+00 : f32
    %94 = vector.broadcast %cst_28 : f32 to vector<8x32xf32>
    %95 = arith.subf %94, %87 : vector<8x32xf32>
    %96 = arith.mulf %95, %93 : vector<8x32xf32>
    %97 = arith.mulf %87, %77 : vector<8x32xf32>
    %98 = arith.addf %96, %97 : vector<8x32xf32>
    %c32 = arith.constant 32 : index
    %c0_29 = arith.constant 0 : index
    %99 = vector.load %arg5[%c32, %c0_29] : memref<64x128xf32, #tpu.memory_space<vmem>>, vector<8x128xf32>
    %cst_30 = arith.constant dense<0.000000e+00> : vector<8x128xf32>
    %100 = tpu.matmul %98, %7, %cst_30 {dimension_numbers = #tpu.dot_dimension_numbers<[1], [0], [0], [1], [0, 0, 1, 1], [], []>} : vector<8x32xf32>, vector<32x128xf32>, vector<8x128xf32> -> vector<8x128xf32>
    %101 = arith.addf %99, %100 : vector<8x128xf32>
    %102 = arith.negf %101 : vector<8x128xf32>
    %103 = math.exp %102 : vector<8x128xf32>
    %cst_31 = arith.constant 1.000000e+00 : f32
    %104 = vector.broadcast %cst_31 : f32 to vector<8x128xf32>
    %105 = arith.addf %104, %103 : vector<8x128xf32>
    %106 = arith.divf %104, %105 : vector<8x128xf32>
    %107 = vector.extract_strided_slice %106 {offsets = [0, 0], sizes = [8, 32], strides = [1, 1]} : vector<8x128xf32> to vector<8x32xf32>
    %108 = vector.extract_strided_slice %106 {offsets = [0, 32], sizes = [8, 32], strides = [1, 1]} : vector<8x128xf32> to vector<8x32xf32>
    %109 = vector.extract_strided_slice %99 {offsets = [0, 64], sizes = [8, 32], strides = [1, 1]} : vector<8x128xf32> to vector<8x32xf32>
    %110 = vector.extract_strided_slice %100 {offsets = [0, 64], sizes = [8, 32], strides = [1, 1]} : vector<8x128xf32> to vector<8x32xf32>
    %111 = arith.addf %110, %10 : vector<8x32xf32>
    %112 = arith.mulf %107, %111 : vector<8x32xf32>
    %113 = arith.addf %109, %112 : vector<8x32xf32>
    %114 = math.tanh %113 : vector<8x32xf32>
    %cst_32 = arith.constant 1.000000e+00 : f32
    %115 = vector.broadcast %cst_32 : f32 to vector<8x32xf32>
    %116 = arith.subf %115, %108 : vector<8x32xf32>
    %117 = arith.mulf %116, %114 : vector<8x32xf32>
    %118 = arith.mulf %108, %98 : vector<8x32xf32>
    %119 = arith.addf %117, %118 : vector<8x32xf32>
    %c40_33 = arith.constant 40 : index
    %c0_34 = arith.constant 0 : index
    %120 = vector.load %arg5[%c40_33, %c0_34] : memref<64x128xf32, #tpu.memory_space<vmem>>, vector<8x128xf32>
    %cst_35 = arith.constant dense<0.000000e+00> : vector<8x128xf32>
    %121 = tpu.matmul %119, %7, %cst_35 {dimension_numbers = #tpu.dot_dimension_numbers<[1], [0], [0], [1], [0, 0, 1, 1], [], []>} : vector<8x32xf32>, vector<32x128xf32>, vector<8x128xf32> -> vector<8x128xf32>
    %122 = arith.addf %120, %121 : vector<8x128xf32>
    %123 = arith.negf %122 : vector<8x128xf32>
    %124 = math.exp %123 : vector<8x128xf32>
    %cst_36 = arith.constant 1.000000e+00 : f32
    %125 = vector.broadcast %cst_36 : f32 to vector<8x128xf32>
    %126 = arith.addf %125, %124 : vector<8x128xf32>
    %127 = arith.divf %125, %126 : vector<8x128xf32>
    %128 = vector.extract_strided_slice %127 {offsets = [0, 0], sizes = [8, 32], strides = [1, 1]} : vector<8x128xf32> to vector<8x32xf32>
    %129 = vector.extract_strided_slice %127 {offsets = [0, 32], sizes = [8, 32], strides = [1, 1]} : vector<8x128xf32> to vector<8x32xf32>
    %130 = vector.extract_strided_slice %120 {offsets = [0, 64], sizes = [8, 32], strides = [1, 1]} : vector<8x128xf32> to vector<8x32xf32>
    %131 = vector.extract_strided_slice %121 {offsets = [0, 64], sizes = [8, 32], strides = [1, 1]} : vector<8x128xf32> to vector<8x32xf32>
    %132 = arith.addf %131, %10 : vector<8x32xf32>
    %133 = arith.mulf %128, %132 : vector<8x32xf32>
    %134 = arith.addf %130, %133 : vector<8x32xf32>
    %135 = math.tanh %134 : vector<8x32xf32>
    %cst_37 = arith.constant 1.000000e+00 : f32
    %136 = vector.broadcast %cst_37 : f32 to vector<8x32xf32>
    %137 = arith.subf %136, %129 : vector<8x32xf32>
    %138 = arith.mulf %137, %135 : vector<8x32xf32>
    %139 = arith.mulf %129, %119 : vector<8x32xf32>
    %140 = arith.addf %138, %139 : vector<8x32xf32>
    %c48 = arith.constant 48 : index
    %c0_38 = arith.constant 0 : index
    %141 = vector.load %arg5[%c48, %c0_38] : memref<64x128xf32, #tpu.memory_space<vmem>>, vector<8x128xf32>
    %cst_39 = arith.constant dense<0.000000e+00> : vector<8x128xf32>
    %142 = tpu.matmul %140, %7, %cst_39 {dimension_numbers = #tpu.dot_dimension_numbers<[1], [0], [0], [1], [0, 0, 1, 1], [], []>} : vector<8x32xf32>, vector<32x128xf32>, vector<8x128xf32> -> vector<8x128xf32>
    %143 = arith.addf %141, %142 : vector<8x128xf32>
    %144 = arith.negf %143 : vector<8x128xf32>
    %145 = math.exp %144 : vector<8x128xf32>
    %cst_40 = arith.constant 1.000000e+00 : f32
    %146 = vector.broadcast %cst_40 : f32 to vector<8x128xf32>
    %147 = arith.addf %146, %145 : vector<8x128xf32>
    %148 = arith.divf %146, %147 : vector<8x128xf32>
    %149 = vector.extract_strided_slice %148 {offsets = [0, 0], sizes = [8, 32], strides = [1, 1]} : vector<8x128xf32> to vector<8x32xf32>
    %150 = vector.extract_strided_slice %148 {offsets = [0, 32], sizes = [8, 32], strides = [1, 1]} : vector<8x128xf32> to vector<8x32xf32>
    %151 = vector.extract_strided_slice %141 {offsets = [0, 64], sizes = [8, 32], strides = [1, 1]} : vector<8x128xf32> to vector<8x32xf32>
    %152 = vector.extract_strided_slice %142 {offsets = [0, 64], sizes = [8, 32], strides = [1, 1]} : vector<8x128xf32> to vector<8x32xf32>
    %153 = arith.addf %152, %10 : vector<8x32xf32>
    %154 = arith.mulf %149, %153 : vector<8x32xf32>
    %155 = arith.addf %151, %154 : vector<8x32xf32>
    %156 = math.tanh %155 : vector<8x32xf32>
    %cst_41 = arith.constant 1.000000e+00 : f32
    %157 = vector.broadcast %cst_41 : f32 to vector<8x32xf32>
    %158 = arith.subf %157, %150 : vector<8x32xf32>
    %159 = arith.mulf %158, %156 : vector<8x32xf32>
    %160 = arith.mulf %150, %140 : vector<8x32xf32>
    %161 = arith.addf %159, %160 : vector<8x32xf32>
    %c56 = arith.constant 56 : index
    %c0_42 = arith.constant 0 : index
    %162 = vector.load %arg5[%c56, %c0_42] : memref<64x128xf32, #tpu.memory_space<vmem>>, vector<8x128xf32>
    %cst_43 = arith.constant dense<0.000000e+00> : vector<8x128xf32>
    %163 = tpu.matmul %161, %7, %cst_43 {dimension_numbers = #tpu.dot_dimension_numbers<[1], [0], [0], [1], [0, 0, 1, 1], [], []>} : vector<8x32xf32>, vector<32x128xf32>, vector<8x128xf32> -> vector<8x128xf32>
    %164 = arith.addf %162, %163 : vector<8x128xf32>
    %165 = arith.negf %164 : vector<8x128xf32>
    %166 = math.exp %165 : vector<8x128xf32>
    %cst_44 = arith.constant 1.000000e+00 : f32
    %167 = vector.broadcast %cst_44 : f32 to vector<8x128xf32>
    %168 = arith.addf %167, %166 : vector<8x128xf32>
    %169 = arith.divf %167, %168 : vector<8x128xf32>
    %170 = vector.extract_strided_slice %169 {offsets = [0, 0], sizes = [8, 32], strides = [1, 1]} : vector<8x128xf32> to vector<8x32xf32>
    %171 = vector.extract_strided_slice %169 {offsets = [0, 32], sizes = [8, 32], strides = [1, 1]} : vector<8x128xf32> to vector<8x32xf32>
    %172 = vector.extract_strided_slice %162 {offsets = [0, 64], sizes = [8, 32], strides = [1, 1]} : vector<8x128xf32> to vector<8x32xf32>
    %173 = vector.extract_strided_slice %163 {offsets = [0, 64], sizes = [8, 32], strides = [1, 1]} : vector<8x128xf32> to vector<8x32xf32>
    %174 = arith.addf %173, %10 : vector<8x32xf32>
    %175 = arith.mulf %170, %174 : vector<8x32xf32>
    %176 = arith.addf %172, %175 : vector<8x32xf32>
    %177 = math.tanh %176 : vector<8x32xf32>
    %cst_45 = arith.constant 1.000000e+00 : f32
    %178 = vector.broadcast %cst_45 : f32 to vector<8x32xf32>
    %179 = arith.subf %178, %171 : vector<8x32xf32>
    %180 = arith.mulf %179, %177 : vector<8x32xf32>
    %181 = arith.mulf %171, %161 : vector<8x32xf32>
    %182 = arith.addf %180, %181 : vector<8x32xf32>
    %183 = arith.mulf %182, %13 : vector<8x32xf32>
    %cst_46 = arith.constant dense<0.000000e+00> : vector<8xf32>
    %184 = vector.multi_reduction <add>, %183, %cst_46 [1] : vector<8x32xf32> to vector<8xf32>
    %185 = vector.shape_cast %184 : vector<8xf32> to vector<8x1xf32>
    %c0_47 = arith.constant 0 : index
    %186 = memref.load %arg3[%c0_47] : memref<2xf32, #tpu.memory_space<smem>>
    %187 = vector.broadcast %186 : f32 to vector<8x1xf32>
    %188 = arith.addf %185, %187 : vector<8x1xf32>
    %c1 = arith.constant 1 : index
    %189 = memref.load %arg3[%c1] : memref<2xf32, #tpu.memory_space<smem>>
    %cst_48 = arith.constant 0.000000e+00 : f32
    %190 = vector.broadcast %cst_48 : f32 to vector<8x1xf32>
    %191 = arith.cmpf oge, %188, %190 : vector<8x1xf32>
    %192 = vector.broadcast %189 : f32 to vector<8x1xf32>
    %193 = arith.mulf %192, %188 : vector<8x1xf32>
    %194 = arith.select %191, %188, %193 : vector<8x1xi1>, vector<8x1xf32>
    %195 = vector.shape_cast %194 : vector<8x1xf32> to vector<8x1xf32>
    %196 = vector.broadcast %195 : vector<8x1xf32> to vector<8x128xf32>
    %c0_49 = arith.constant 0 : index
    %c0_50 = arith.constant 0 : index
    %197 = vector.load %arg4[%c0_49, %c0_50] : memref<8x128xf32, #tpu.memory_space<vmem>>, vector<8x128xf32>
    tpu.vector_store %arg4[%c0_49, %c0_50], %196 {strides = array<i32>} : memref<8x128xf32, #tpu.memory_space<vmem>>, vector<8x128xf32>,
    return
  }
}

</mosaic_0001>

<llo_original>
// kernel: tpu_custom_call.1
$region0: #{tpu_custom_call.1}
  #allocation0 [shape = 'u32[]', space=smem, size = 0x4, offset = 0x4, fixed_abs, tag = 'smem constant byte address 0x4 - core index']
  #allocation1 [shape = 'u32[144,128]{1,0:T(1,128)}', space=vmem, size = 0x12000, scoped, tag = 'internal scratch']
  #allocation2 [shape = 'f32[64,128]{1,0:T(8,128)}', space=vmem, size = 0x8000, scoped, tag = 'scratch operand']
  %s0 = inlined_call_operand.vmem [shape: f32[64,8], index: 0, kind: input, shape index: {}]
  %s1 = inlined_call_operand.vmem [shape: f32[8,32], index: 1, kind: input, shape index: {}]
  %s2 = inlined_call_operand.vmem [shape: f32[48,128], index: 2, kind: input, shape index: {}]
  %s3 = inlined_call_operand.vmem [shape: f32[2], index: 3, kind: input, shape index: {}]
  %s4 = inlined_call_operand.hbm [shape: f32[8,128], index: 4, kind: output, shape index: {}]
  %s5 = sld [smem:[#allocation0]]
  $region30: #{tpu_custom_call.1} parent=0
    _
  %s7 = ssub.s32 1, %s5
  %s8 = scalar_select 0, %s7, %s5
  $region1: #{tpu_custom_call.1} parent=0
    #allocation3 [shape = 'u8[512]{0}', space=smem, size = 0x200, scoped, tag = 'input window, operand 3, single buffered']
    #allocation4 [shape = 's32[1]{0}', space=sflag, size = 0x4, scoped, tag = 'scoped memory for tpu_custom_call.1']
    #allocation5 [shape = 's32[1]{0}', space=sflag, size = 0x4, scoped, tag = 'scoped memory for tpu_custom_call.1']
    #allocation6 [shape = 'u8[4096]{0}', space=vmem, size = 0x1000, scoped, tag = 'output window, operand 0, single buffered']
    %9 = vsyncpa [#allocation5], 0
    %10 = vsyncpa [#allocation4], 0
    // Predicated region
    $region2: #{tpu_custom_call.1} parent=1 // pred_check
      _
    $region3: #{tpu_custom_call.1} parent=1 // pred_check_branch
      %12 = sbr.rel (0) target = $region5
    $region4: #{tpu_custom_call.1} parent=1 // pred_region
      _
    $region5: #{tpu_custom_call.1} parent=1 // pred_fallthru
      _
    // Predicated region
    $region6: #{tpu_custom_call.1} parent=1 // pred_check
      _
    $region7: #{tpu_custom_call.1} parent=1 // pred_check_branch
      %14 = sbr.rel (0) target = $region9
    $region8: #{tpu_custom_call.1} parent=1 // pred_region
      _
    $region9: #{tpu_custom_call.1} parent=1 // pred_fallthru
      _
    // Predicated region
    $region10: #{tpu_custom_call.1} parent=1 // pred_check
      _
    $region11: #{tpu_custom_call.1} parent=1 // pred_check_branch
      %16 = sbr.rel (0) target = $region13
    $region12: #{tpu_custom_call.1} parent=1 // pred_region
      _
    $region13: #{tpu_custom_call.1} parent=1 // pred_fallthru
      _
    // Predicated region
    $region14: #{tpu_custom_call.1} parent=1 // pred_check
      _
    $region15: #{tpu_custom_call.1} parent=1 // pred_check_branch
      %18 = sbr.rel (0) target = $region17
    $region16: #{tpu_custom_call.1} parent=1 // pred_region
      %s20 = ssub.s32 16, 16
      %21 = vsyncadd [#allocation5], %s20
      %s23 = sshll.u32 %s3, 4
      %s24 = int_to_ptr.vmem [resolvable:$true] %s23
      %26 = dma.vmem_to_smem %s24, 16, [#allocation3], [#allocation5]
    $region17: #{tpu_custom_call.1} parent=1 // pred_fallthru
      _
    // Predicated region
    $region18: #{tpu_custom_call.1} parent=1 // pred_check
      _
    $region19: #{tpu_custom_call.1} parent=1 // pred_check_branch
      %28 = sbr.rel (0) target = $region21
    $region20: #{tpu_custom_call.1} parent=1 // pred_region
      %29 = dma.done [#allocation5], 16
    $region21: #{tpu_custom_call.1} parent=1 // pred_fallthru
      _
    %30 = sfence
    %v31 = vld [vmem:[%s0] sm:$0xff]
    %v32 = vld [vmem:[%s0 + $0x8] sm:$0xff]
    %v33 = vld [vmem:[%s0 + $0x10] sm:$0xff]
    %v34 = vld [vmem:[%s0 + $0x18] sm:$0xff]
    %v35 = vld [vmem:[%s0 + $0x20] sm:$0xff]
    %v36 = vld [vmem:[%s0 + $0x28] sm:$0xff]
    %v37 = vld [vmem:[%s0 + $0x30] sm:$0xff]
    %v38 = vld [vmem:[%s0 + $0x38] sm:$0xff]
    %v39 = vld [vmem:[%s2] sm:$0xff]
    %v40 = vld [vmem:[%s2 + $0x28] sm:$0x1]
    %v41 = vlaneseq
    %v42 = vshrl.u32 %v41, 7
    %v43 = vsub.s32 0, %v42
    %v44 = vrot.slane %v40, %v43
    %vm45 = vcmask 64512
    %v47 = vsel %vm45, %v31, 0
    %v50 = vsel %vm45, %v32, 0
    %v53 = vsel %vm45, %v33, 0
    %v56 = vsel %vm45, %v34, 0
    %v59 = vsel %vm45, %v35, 0
    %v62 = vsel %vm45, %v36, 0
    %v65 = vsel %vm45, %v37, 0
    %v68 = vsel %vm45, %v38, 0
    %70 = vmatprep.subr.mxu0 0.0
    %71 = vmatpush1.msra.mxu0 %v39
    %72 = vmatprep.subr.mxu0 0.0
    %73 = vmatpush1.msra.mxu0 0.0
    %74 = vmatprep.subr.mxu0 0.0
    %75 = vmatpush1.msra.mxu0 0.0
    %76 = vmatprep.subr.mxu0 0.0
    %77 = vmatpush1.msra.mxu0 0.0
    %78 = vmatprep.subr.mxu0 0.0
    %79 = vmatpush1.msra.mxu0 0.0
    %80 = vmatprep.subr.mxu0 0.0
    %81 = vmatpush1.msra.mxu0 0.0
    %82 = vmatprep.subr.mxu0 0.0
    %83 = vmatpush1.msra.mxu0 0.0
    %84 = vmatprep.subr.mxu0 0.0
    %85 = vmatpush1.msra.mxu0 0.0
    %86 = vmatprep.subr.mxu0 0.0
    %87 = vmatpush1.msra.mxu0 0.0
    %88 = vmatprep.subr.mxu0 0.0
    %89 = vmatpush1.msra.mxu0 0.0
    %90 = vmatprep.subr.mxu0 0.0
    %91 = vmatpush1.msra.mxu0 0.0
    %92 = vmatprep.subr.mxu0 0.0
    %93 = vmatpush1.msra.mxu0 0.0
    %94 = vmatprep.subr.mxu0 0.0
    %95 = vmatpush1.msra.mxu0 0.0
    %96 = vmatprep.subr.mxu0 0.0
    %97 = vmatpush1.msra.mxu0 0.0
    %98 = vmatprep.subr.mxu0 0.0
    %99 = vmatpush1.msra.mxu0 0.0
    %100 = vmatprep.subr.mxu0 0.0
    %101 = vmatpush1.msra.mxu0 0.0
    %102 = vmatprep.subr.mxu0 0.0
    %103 = vmatpush1.msra.mxu0 0.0
    %104 = vmatprep.subr.mxu0 0.0
    %105 = vmatpush1.msra.mxu0 0.0
    %106 = vmatprep.subr.mxu0 0.0
    %107 = vmatpush1.msra.mxu0 0.0
    %108 = vmatprep.subr.mxu0 0.0
    %109 = vmatpush1.msra.mxu0 0.0
    %110 = vmatprep.subr.mxu0 0.0
    %111 = vmatpush1.msra.mxu0 0.0
    %112 = vmatprep.subr.mxu0 0.0
    %113 = vmatpush1.msra.mxu0 0.0
    %114 = vmatprep.subr.mxu0 0.0
    %115 = vmatpush1.msra.mxu0 0.0
    %116 = vmatprep.subr.mxu0 0.0
    %117 = vmatpush1.msra.mxu0 0.0
    %118 = vmatprep.subr.mxu0 0.0
    %119 = vmatpush1.msra.mxu0 0.0
    %120 = vmatprep.subr.mxu0 0.0
    %121 = vmatpush1.msra.mxu0 0.0
    %122 = vmatprep.subr.mxu0 0.0
    %123 = vmatpush1.msra.mxu0 0.0
    %124 = vmatprep.subr.mxu0 0.0
    %125 = vmatpush1.msra.mxu0 0.0
    %126 = vmatprep.subr.mxu0 0.0
    %127 = vmatpush1.msra.mxu0 0.0
    %128 = vmatprep.subr.mxu0 0.0
    %129 = vmatpush1.msra.mxu0 0.0
    %130 = vmatprep.subr.mxu0 0.0
    %131 = vmatpush1.msra.mxu0 0.0
    %132 = vmatprep.subr.mxu0 0.0
    %133 = vmatpush1.msra.mxu0 0.0
    %134 = vmatprep.mubr.f32.mxu0 0.0
    %135 = vmatmul.mubr.f32.gmra.mrb[0].mxu0 %v47
    %v136 = vpop.f32.mrb[0].mxu0
    %v137 = vadd.f32 %v44, %v136
    %v138 = vpop.f32.mrb[0].mxu0
    %139 = vmatprep.mubr.f32.mxu0 0.0
    %140 = vmatmul.mubr.f32.gmra.mrb[0].mxu0 %v50
    %v141 = vpop.f32.mrb[0].mxu0
    %v142 = vadd.f32 %v44, %v141
    %v143 = vpop.f32.mrb[0].mxu0
    %144 = vmatprep.mubr.f32.mxu0 0.0
    %145 = vmatmul.mubr.f32.gmra.mrb[0].mxu0 %v53
    %v146 = vpop.f32.mrb[0].mxu0
    %v147 = vadd.f32 %v44, %v146
    %v148 = vpop.f32.mrb[0].mxu0
    %149 = vmatprep.mubr.f32.mxu0 0.0
    %150 = vmatmul.mubr.f32.gmra.mrb[0].mxu0 %v56
    %v151 = vpop.f32.mrb[0].mxu0
    %v152 = vadd.f32 %v44, %v151
    %v153 = vpop.f32.mrb[0].mxu0
    %154 = vmatprep.mubr.f32.mxu0 0.0
    %155 = vmatmul.mubr.f32.gmra.mrb[0].mxu0 %v59
    %v156 = vpop.f32.mrb[0].mxu0
    %v157 = vadd.f32 %v44, %v156
    %v158 = vpop.f32.mrb[0].mxu0
    %159 = vmatprep.mubr.f32.mxu0 0.0
    %160 = vmatmul.mubr.f32.gmra.mrb[0].mxu0 %v62
    %v161 = vpop.f32.mrb[0].mxu0
    %v162 = vadd.f32 %v44, %v161
    %v163 = vpop.f32.mrb[0].mxu0
    %164 = vmatprep.mubr.f32.mxu0 0.0
    %165 = vmatmul.mubr.f32.gmra.mrb[0].mxu0 %v65
    %v166 = vpop.f32.mrb[0].mxu0
    %v167 = vadd.f32 %v44, %v166
    %v168 = vpop.f32.mrb[0].mxu0
    %169 = vmatprep.mubr.f32.mxu0 0.0
    %170 = vmatmul.mubr.f32.gmra.mrb[0].mxu0 %v68
    %v171 = vpop.f32.mrb[0].mxu0
    %v172 = vadd.f32 %v44, %v171
    %v173 = vpop.f32.mrb[0].mxu0
    %174 = vdwg.mxu0
    %175 = vst [vmem:[#allocation2] sm:$0xff] %v137
    %176 = vst [vmem:[#allocation2 + $0x8] sm:$0xff] %v142
    %177 = vst [vmem:[#allocation2 + $0x10] sm:$0xff] %v147
    %178 = vst [vmem:[#allocation2 + $0x18] sm:$0xff] %v152
    %179 = vst [vmem:[#allocation2 + $0x20] sm:$0xff] %v157
    %180 = vst [vmem:[#allocation2 + $0x28] sm:$0xff] %v162
    %181 = vst [vmem:[#allocation2 + $0x30] sm:$0xff] %v167
    %182 = vst [vmem:[#allocation2 + $0x38] sm:$0xff] %v172
    %v183 = vld [vmem:[%s2 + $0x8] sm:$0xff]
    %v184 = vld [vmem:[%s2 + $0x10] sm:$0xff]
    %v185 = vld [vmem:[%s2 + $0x18] sm:$0xff]
    %v186 = vld [vmem:[%s2 + $0x20] sm:$0xff]
    %v187 = vld [vmem:[%s2 + $0x29] sm:$0x1]
    %v188 = vlaneseq
    %v189 = vshrl.u32 %v188, 7
    %v190 = vsub.s32 0, %v189
    %v191 = vrot.slane %v187, %v190
    %v192 = vld [vmem:[%s2 + $0x2a] sm:$0x1]
    %v193 = vlaneseq
    %v194 = vshrl.u32 %v193, 7
    %v195 = vsub.s32 0, %v194
    %v196 = vrot.slane %v192, %v195
    %v197 = vld [vmem:[%s1] sm:$0xff]
    %v198 = vld [vmem:[#allocation2] sm:$0xff]
    %vm199 = vcmask 261120
    %v201 = vsel %vm199, %v197, 0
    %203 = vmatprep.subr.mxu0 0.0
    %204 = vmatpush1.msra.mxu0 %v183
    %205 = vmatprep.subr.mxu0 0.0
    %206 = vmatpush1.msra.mxu0 %v184
    %207 = vmatprep.subr.mxu0 0.0
    %208 = vmatpush1.msra.mxu0 %v185
    %209 = vmatprep.subr.mxu0 0.0
    %210 = vmatpush1.msra.mxu0 %v186
    %211 = vmatprep.subr.mxu0 0.0
    %212 = vmatpush1.msra.mxu0 0.0
    %213 = vmatprep.subr.mxu0 0.0
    %214 = vmatpush1.msra.mxu0 0.0
    %215 = vmatprep.subr.mxu0 0.0
    %216 = vmatpush1.msra.mxu0 0.0
    %217 = vmatprep.subr.mxu0 0.0
    %218 = vmatpush1.msra.mxu0 0.0
    %219 = vmatprep.subr.mxu0 0.0
    %220 = vmatpush1.msra.mxu0 0.0
    %221 = vmatprep.subr.mxu0 0.0
    %222 = vmatpush1.msra.mxu0 0.0
    %223 = vmatprep.subr.mxu0 0.0
    %224 = vmatpush1.msra.mxu0 0.0
    %225 = vmatprep.subr.mxu0 0.0
    %226 = vmatpush1.msra.mxu0 0.0
    %227 = vmatprep.subr.mxu0 0.0
    %228 = vmatpush1.msra.mxu0 0.0
    %229 = vmatprep.subr.mxu0 0.0
    %230 = vmatpush1.msra.mxu0 0.0
    %231 = vmatprep.subr.mxu0 0.0
    %232 = vmatpush1.msra.mxu0 0.0
    %233 = vmatprep.subr.mxu0 0.0
    %234 = vmatpush1.msra.mxu0 0.0
    %235 = vmatprep.subr.mxu0 0.0
    %236 = vmatpush1.msra.mxu0 0.0
    %237 = vmatprep.subr.mxu0 0.0
    %238 = vmatpush1.msra.mxu0 0.0
    %239 = vmatprep.subr.mxu0 0.0
    %240 = vmatpush1.msra.mxu0 0.0
    %241 = vmatprep.subr.mxu0 0.0
    %242 = vmatpush1.msra.mxu0 0.0
    %243 = vmatprep.subr.mxu0 0.0
    %244 = vmatpush1.msra.mxu0 0.0
    %245 = vmatprep.subr.mxu0 0.0
    %246 = vmatpush1.msra.mxu0 0.0
    %247 = vmatprep.subr.mxu0 0.0
    %248 = vmatpush1.msra.mxu0 0.0
    %249 = vmatprep.subr.mxu0 0.0
    %250 = vmatpush1.msra.mxu0 0.0
    %251 = vmatprep.subr.mxu0 0.0
    %252 = vmatpush1.msra.mxu0 0.0
    %253 = vmatprep.subr.mxu0 0.0
    %254 = vmatpush1.msra.mxu0 0.0
    %255 = vmatprep.subr.mxu0 0.0
    %256 = vmatpush1.msra.mxu0 0.0
    %257 = vmatprep.subr.mxu0 0.0
    %258 = vmatpush1.msra.mxu0 0.0
    %259 = vmatprep.subr.mxu0 0.0
    %260 = vmatpush1.msra.mxu0 0.0
    %261 = vmatprep.subr.mxu0 0.0
    %262 = vmatpush1.msra.mxu0 0.0
    %263 = vmatprep.subr.mxu0 0.0
    %264 = vmatpush1.msra.mxu0 0.0
    %265 = vmatprep.subr.mxu0 0.0
    %266 = vmatpush1.msra.mxu0 0.0
    %267 = vmatprep.mubr.f32.mxu0 0.0
    %268 = vmatmul.mubr.f32.gmra.mrb[0].mxu0 %v201
    %v269 = vpop.f32.mrb[0].mxu0
    %v270 = vadd.f32 0.0, %v269
    %v271 = vpop.f32.mrb[0].mxu0
    %272 = vdwg.mxu0
    %v273 = vadd.f32 %v198, %v270
    %v274 = vxor.u32 %v273, 2147483648
    %v275 = vmul.f32 %v274, 1.442695
    %v276 = vpow.pop %v275
    %v277 = vadd.f32 %v276, 1.0
    %v278 = vrcp.pop %v277
    %v279 = vmul.f32 1.0, %v278
    %281 = vrot.lane.b32.xlu0 %v191, 64
    %v282 = vpop.permute.xlu0 %281
    %v284 = vadd.f32 %v270, %v282
    %286 = vrot.lane.b32.xlu0 %v284, 64
    %v287 = vpop.permute.xlu0 %286
    %v289 = vmul.f32 %v279, %v287
    %291 = vrot.lane.b32.xlu0 %v289, 64
    %v292 = vpop.permute.xlu0 %291
    %v294 = vadd.f32 %v198, %v292
    %v295 = vtanh.pop %v294
    %v296 = vsub.f32 1.0, %v279
    %298 = vrot.lane.b32.xlu0 %v295, 96
    %v299 = vpop.permute.xlu0 %298
    %v301 = vmul.f32 %v296, %v299
    %302 = vrot.lane.b32.xlu0 %v197, 32
    %v303 = vpop.permute.xlu0 %302
    %v305 = vmul.f32 %v279, %v303
    %v306 = vadd.f32 %v301, %v305
    %v307 = vld [vmem:[#allocation2 + $0x8] sm:$0xff]
    %309 = vrot.lane.b32.xlu0 %v306, 96
    %v310 = vpop.permute.xlu0 %309
    %v311 = vsel %vm199, %v310, 0
    %313 = vmatprep.subr.mxu0 0.0
    %314 = vmatpush1.msra.mxu0 %v183
    %315 = vmatprep.subr.mxu0 0.0
    %316 = vmatpush1.msra.mxu0 %v184
    %317 = vmatprep.subr.mxu0 0.0
    %318 = vmatpush1.msra.mxu0 %v185
    %319 = vmatprep.subr.mxu0 0.0
    %320 = vmatpush1.msra.mxu0 %v186
    %321 = vmatprep.subr.mxu0 0.0
    %322 = vmatpush1.msra.mxu0 0.0
    %323 = vmatprep.subr.mxu0 0.0
    %324 = vmatpush1.msra.mxu0 0.0
    %325 = vmatprep.subr.mxu0 0.0
    %326 = vmatpush1.msra.mxu0 0.0
    %327 = vmatprep.subr.mxu0 0.0
    %328 = vmatpush1.msra.mxu0 0.0
    %329 = vmatprep.subr.mxu0 0.0
    %330 = vmatpush1.msra.mxu0 0.0
    %331 = vmatprep.subr.mxu0 0.0
    %332 = vmatpush1.msra.mxu0 0.0
    %333 = vmatprep.subr.mxu0 0.0
    %334 = vmatpush1.msra.mxu0 0.0
    %335 = vmatprep.subr.mxu0 0.0
    %336 = vmatpush1.msra.mxu0 0.0
    %337 = vmatprep.subr.mxu0 0.0
    %338 = vmatpush1.msra.mxu0 0.0
    %339 = vmatprep.subr.mxu0 0.0
    %340 = vmatpush1.msra.mxu0 0.0
    %341 = vmatprep.subr.mxu0 0.0
    %342 = vmatpush1.msra.mxu0 0.0
    %343 = vmatprep.subr.mxu0 0.0
    %344 = vmatpush1.msra.mxu0 0.0
    %345 = vmatprep.subr.mxu0 0.0
    %346 = vmatpush1.msra.mxu0 0.0
    %347 = vmatprep.subr.mxu0 0.0
    %348 = vmatpush1.msra.mxu0 0.0
    %349 = vmatprep.subr.mxu0 0.0
    %350 = vmatpush1.msra.mxu0 0.0
    %351 = vmatprep.subr.mxu0 0.0
    %352 = vmatpush1.msra.mxu0 0.0
    %353 = vmatprep.subr.mxu0 0.0
    %354 = vmatpush1.msra.mxu0 0.0
    %355 = vmatprep.subr.mxu0 0.0
    %356 = vmatpush1.msra.mxu0 0.0
    %357 = vmatprep.subr.mxu0 0.0
    %358 = vmatpush1.msra.mxu0 0.0
    %359 = vmatprep.subr.mxu0 0.0
    %360 = vmatpush1.msra.mxu0 0.0
    %361 = vmatprep.subr.mxu0 0.0
    %362 = vmatpush1.msra.mxu0 0.0
    %363 = vmatprep.subr.mxu0 0.0
    %364 = vmatpush1.msra.mxu0 0.0
    %365 = vmatprep.subr.mxu0 0.0
    %366 = vmatpush1.msra.mxu0 0.0
    %367 = vmatprep.subr.mxu0 0.0
    %368 = vmatpush1.msra.mxu0 0.0
    %369 = vmatprep.subr.mxu0 0.0
    %370 = vmatpush1.msra.mxu0 0.0
    %371 = vmatprep.subr.mxu0 0.0
    %372 = vmatpush1.msra.mxu0 0.0
    %373 = vmatprep.subr.mxu0 0.0
    %374 = vmatpush1.msra.mxu0 0.0
    %375 = vmatprep.subr.mxu0 0.0
    %376 = vmatpush1.msra.mxu0 0.0
    %377 = vmatprep.mubr.f32.mxu0 0.0
    %378 = vmatmul.mubr.f32.gmra.mrb[0].mxu0 %v311
    %v379 = vpop.f32.mrb[0].mxu0
    %v380 = vadd.f32 0.0, %v379
    %v381 = vpop.f32.mrb[0].mxu0
    %382 = vdwg.mxu0
    %v383 = vadd.f32 %v307, %v380
    %v384 = vxor.u32 %v383, 2147483648
    %v385 = vmul.f32 %v384, 1.442695
    %v386 = vpow.pop %v385
    %v387 = vadd.f32 %v386, 1.0
    %v388 = vrcp.pop %v387
    %v389 = vmul.f32 1.0, %v388
    %v390 = vadd.f32 %v380, %v282
    %392 = vrot.lane.b32.xlu0 %v390, 64
    %v393 = vpop.permute.xlu0 %392
    %v395 = vmul.f32 %v389, %v393
    %397 = vrot.lane.b32.xlu0 %v395, 64
    %v398 = vpop.permute.xlu0 %397
    %v400 = vadd.f32 %v307, %v398
    %v401 = vtanh.pop %v400
    %v402 = vsub.f32 1.0, %v389
    %404 = vrot.lane.b32.xlu0 %v401, 96
    %v405 = vpop.permute.xlu0 %404
    %v407 = vmul.f32 %v402, %v405
    %v408 = vmul.f32 %v389, %v306
    %v409 = vadd.f32 %v407, %v408
    %v410 = vld [vmem:[#allocation2 + $0x10] sm:$0xff]
    %412 = vrot.lane.b32.xlu0 %v409, 96
    %v413 = vpop.permute.xlu0 %412
    %v414 = vsel %vm199, %v413, 0
    %416 = vmatprep.subr.mxu0 0.0
    %417 = vmatpush1.msra.mxu0 %v183
    %418 = vmatprep.subr.mxu0 0.0
    %419 = vmatpush1.msra.mxu0 %v184
    %420 = vmatprep.subr.mxu0 0.0
    %421 = vmatpush1.msra.mxu0 %v185
    %422 = vmatprep.subr.mxu0 0.0
    %423 = vmatpush1.msra.mxu0 %v186
    %424 = vmatprep.subr.mxu0 0.0
    %425 = vmatpush1.msra.mxu0 0.0
    %426 = vmatprep.subr.mxu0 0.0
    %427 = vmatpush1.msra.mxu0 0.0
    %428 = vmatprep.subr.mxu0 0.0
    %429 = vmatpush1.msra.mxu0 0.0
    %430 = vmatprep.subr.mxu0 0.0
    %431 = vmatpush1.msra.mxu0 0.0
    %432 = vmatprep.subr.mxu0 0.0
    %433 = vmatpush1.msra.mxu0 0.0
    %434 = vmatprep.subr.mxu0 0.0
    %435 = vmatpush1.msra.mxu0 0.0
    %436 = vmatprep.subr.mxu0 0.0
    %437 = vmatpush1.msra.mxu0 0.0
    %438 = vmatprep.subr.mxu0 0.0
    %439 = vmatpush1.msra.mxu0 0.0
    %440 = vmatprep.subr.mxu0 0.0
    %441 = vmatpush1.msra.mxu0 0.0
    %442 = vmatprep.subr.mxu0 0.0
    %443 = vmatpush1.msra.mxu0 0.0
    %444 = vmatprep.subr.mxu0 0.0
    %445 = vmatpush1.msra.mxu0 0.0
    %446 = vmatprep.subr.mxu0 0.0
    %447 = vmatpush1.msra.mxu0 0.0
    %448 = vmatprep.subr.mxu0 0.0
    %449 = vmatpush1.msra.mxu0 0.0
    %450 = vmatprep.subr.mxu0 0.0
    %451 = vmatpush1.msra.mxu0 0.0
    %452 = vmatprep.subr.mxu0 0.0
    %453 = vmatpush1.msra.mxu0 0.0
    %454 = vmatprep.subr.mxu0 0.0
    %455 = vmatpush1.msra.mxu0 0.0
    %456 = vmatprep.subr.mxu0 0.0
    %457 = vmatpush1.msra.mxu0 0.0
    %458 = vmatprep.subr.mxu0 0.0
    %459 = vmatpush1.msra.mxu0 0.0
    %460 = vmatprep.subr.mxu0 0.0
    %461 = vmatpush1.msra.mxu0 0.0
    %462 = vmatprep.subr.mxu0 0.0
    %463 = vmatpush1.msra.mxu0 0.0
    %464 = vmatprep.subr.mxu0 0.0
    %465 = vmatpush1.msra.mxu0 0.0
    %466 = vmatprep.subr.mxu0 0.0
    %467 = vmatpush1.msra.mxu0 0.0
    %468 = vmatprep.subr.mxu0 0.0
    %469 = vmatpush1.msra.mxu0 0.0
    %470 = vmatprep.subr.mxu0 0.0
    %471 = vmatpush1.msra.mxu0 0.0
    %472 = vmatprep.subr.mxu0 0.0
    %473 = vmatpush1.msra.mxu0 0.0
    %474 = vmatprep.subr.mxu0 0.0
    %475 = vmatpush1.msra.mxu0 0.0
    %476 = vmatprep.subr.mxu0 0.0
    %477 = vmatpush1.msra.mxu0 0.0
    %478 = vmatprep.subr.mxu0 0.0
    %479 = vmatpush1.msra.mxu0 0.0
    %480 = vmatprep.mubr.f32.mxu0 0.0
    %481 = vmatmul.mubr.f32.gmra.mrb[0].mxu0 %v414
    %v482 = vpop.f32.mrb[0].mxu0
    %v483 = vadd.f32 0.0, %v482
    %v484 = vpop.f32.mrb[0].mxu0
    %485 = vdwg.mxu0
    %v486 = vadd.f32 %v410, %v483
    %v487 = vxor.u32 %v486, 2147483648
    %v488 = vmul.f32 %v487, 1.442695
    %v489 = vpow.pop %v488
    %v490 = vadd.f32 %v489, 1.0
    %v491 = vrcp.pop %v490
    %v492 = vmul.f32 1.0, %v491
    %v493 = vadd.f32 %v483, %v282
    %495 = vrot.lane.b32.xlu0 %v493, 64
    %v496 = vpop.permute.xlu0 %495
    %v498 = vmul.f32 %v492, %v496
    %500 = vrot.lane.b32.xlu0 %v498, 64
    %v501 = vpop.permute.xlu0 %500
    %v503 = vadd.f32 %v410, %v501
    %v504 = vtanh.pop %v503
    %v505 = vsub.f32 1.0, %v492
    %507 = vrot.lane.b32.xlu0 %v504, 96
    %v508 = vpop.permute.xlu0 %507
    %v510 = vmul.f32 %v505, %v508
    %v511 = vmul.f32 %v492, %v409
    %v512 = vadd.f32 %v510, %v511
    %v513 = vld [vmem:[#allocation2 + $0x18] sm:$0xff]
    %515 = vrot.lane.b32.xlu0 %v512, 96
    %v516 = vpop.permute.xlu0 %515
    %v517 = vsel %vm199, %v516, 0
    %519 = vmatprep.subr.mxu0 0.0
    %520 = vmatpush1.msra.mxu0 %v183
    %521 = vmatprep.subr.mxu0 0.0
    %522 = vmatpush1.msra.mxu0 %v184
    %523 = vmatprep.subr.mxu0 0.0
    %524 = vmatpush1.msra.mxu0 %v185
    %525 = vmatprep.subr.mxu0 0.0
    %526 = vmatpush1.msra.mxu0 %v186
    %527 = vmatprep.subr.mxu0 0.0
    %528 = vmatpush1.msra.mxu0 0.0
    %529 = vmatprep.subr.mxu0 0.0
    %530 = vmatpush1.msra.mxu0 0.0
    %531 = vmatprep.subr.mxu0 0.0
    %532 = vmatpush1.msra.mxu0 0.0
    %533 = vmatprep.subr.mxu0 0.0
    %534 = vmatpush1.msra.mxu0 0.0
    %535 = vmatprep.subr.mxu0 0.0
    %536 = vmatpush1.msra.mxu0 0.0
    %537 = vmatprep.subr.mxu0 0.0
    %538 = vmatpush1.msra.mxu0 0.0
    %539 = vmatprep.subr.mxu0 0.0
    %540 = vmatpush1.msra.mxu0 0.0
    %541 = vmatprep.subr.mxu0 0.0
    %542 = vmatpush1.msra.mxu0 0.0
    %543 = vmatprep.subr.mxu0 0.0
    %544 = vmatpush1.msra.mxu0 0.0
    %545 = vmatprep.subr.mxu0 0.0
    %546 = vmatpush1.msra.mxu0 0.0
    %547 = vmatprep.subr.mxu0 0.0
    %548 = vmatpush1.msra.mxu0 0.0
    %549 = vmatprep.subr.mxu0 0.0
    %550 = vmatpush1.msra.mxu0 0.0
    %551 = vmatprep.subr.mxu0 0.0
    %552 = vmatpush1.msra.mxu0 0.0
    %553 = vmatprep.subr.mxu0 0.0
    %554 = vmatpush1.msra.mxu0 0.0
    %555 = vmatprep.subr.mxu0 0.0
    %556 = vmatpush1.msra.mxu0 0.0
    %557 = vmatprep.subr.mxu0 0.0
    %558 = vmatpush1.msra.mxu0 0.0
    %559 = vmatprep.subr.mxu0 0.0
    %560 = vmatpush1.msra.mxu0 0.0
    %561 = vmatprep.subr.mxu0 0.0
    %562 = vmatpush1.msra.mxu0 0.0
    %563 = vmatprep.subr.mxu0 0.0
    %564 = vmatpush1.msra.mxu0 0.0
    %565 = vmatprep.subr.mxu0 0.0
    %566 = vmatpush1.msra.mxu0 0.0
    %567 = vmatprep.subr.mxu0 0.0
    %568 = vmatpush1.msra.mxu0 0.0
    %569 = vmatprep.subr.mxu0 0.0
    %570 = vmatpush1.msra.mxu0 0.0
    %571 = vmatprep.subr.mxu0 0.0
    %572 = vmatpush1.msra.mxu0 0.0
    %573 = vmatprep.subr.mxu0 0.0
    %574 = vmatpush1.msra.mxu0 0.0
    %575 = vmatprep.subr.mxu0 0.0
    %576 = vmatpush1.msra.mxu0 0.0
    %577 = vmatprep.subr.mxu0 0.0
    %578 = vmatpush1.msra.mxu0 0.0
    %579 = vmatprep.subr.mxu0 0.0
    %580 = vmatpush1.msra.mxu0 0.0
    %581 = vmatprep.subr.mxu0 0.0
    %582 = vmatpush1.msra.mxu0 0.0
    %583 = vmatprep.mubr.f32.mxu0 0.0
    %584 = vmatmul.mubr.f32.gmra.mrb[0].mxu0 %v517
    %v585 = vpop.f32.mrb[0].mxu0
    %v586 = vadd.f32 0.0, %v585
    %v587 = vpop.f32.mrb[0].mxu0
    %588 = vdwg.mxu0
    %v589 = vadd.f32 %v513, %v586
    %v590 = vxor.u32 %v589, 2147483648
    %v591 = vmul.f32 %v590, 1.442695
    %v592 = vpow.pop %v591
    %v593 = vadd.f32 %v592, 1.0
    %v594 = vrcp.pop %v593
    %v595 = vmul.f32 1.0, %v594
    %v596 = vadd.f32 %v586, %v282
    %598 = vrot.lane.b32.xlu0 %v596, 64
    %v599 = vpop.permute.xlu0 %598
    %v601 = vmul.f32 %v595, %v599
    %603 = vrot.lane.b32.xlu0 %v601, 64
    %v604 = vpop.permute.xlu0 %603
    %v606 = vadd.f32 %v513, %v604
    %v607 = vtanh.pop %v606
    %v608 = vsub.f32 1.0, %v595
    %610 = vrot.lane.b32.xlu0 %v607, 96
    %v611 = vpop.permute.xlu0 %610
    %v613 = vmul.f32 %v608, %v611
    %v614 = vmul.f32 %v595, %v512
    %v615 = vadd.f32 %v613, %v614
    %v616 = vld [vmem:[#allocation2 + $0x20] sm:$0xff]
    %618 = vrot.lane.b32.xlu0 %v615, 96
    %v619 = vpop.permute.xlu0 %618
    %v620 = vsel %vm199, %v619, 0
    %622 = vmatprep.subr.mxu0 0.0
    %623 = vmatpush1.msra.mxu0 %v183
    %624 = vmatprep.subr.mxu0 0.0
    %625 = vmatpush1.msra.mxu0 %v184
    %626 = vmatprep.subr.mxu0 0.0
    %627 = vmatpush1.msra.mxu0 %v185
    %628 = vmatprep.subr.mxu0 0.0
    %629 = vmatpush1.msra.mxu0 %v186
    %630 = vmatprep.subr.mxu0 0.0
    %631 = vmatpush1.msra.mxu0 0.0
    %632 = vmatprep.subr.mxu0 0.0
    %633 = vmatpush1.msra.mxu0 0.0
    %634 = vmatprep.subr.mxu0 0.0
    %635 = vmatpush1.msra.mxu0 0.0
    %636 = vmatprep.subr.mxu0 0.0
    %637 = vmatpush1.msra.mxu0 0.0
    %638 = vmatprep.subr.mxu0 0.0
    %639 = vmatpush1.msra.mxu0 0.0
    %640 = vmatprep.subr.mxu0 0.0
    %641 = vmatpush1.msra.mxu0 0.0
    %642 = vmatprep.subr.mxu0 0.0
    %643 = vmatpush1.msra.mxu0 0.0
    %644 = vmatprep.subr.mxu0 0.0
    %645 = vmatpush1.msra.mxu0 0.0
    %646 = vmatprep.subr.mxu0 0.0
    %647 = vmatpush1.msra.mxu0 0.0
    %648 = vmatprep.subr.mxu0 0.0
    %649 = vmatpush1.msra.mxu0 0.0
    %650 = vmatprep.subr.mxu0 0.0
    %651 = vmatpush1.msra.mxu0 0.0
    %652 = vmatprep.subr.mxu0 0.0
    %653 = vmatpush1.msra.mxu0 0.0
    %654 = vmatprep.subr.mxu0 0.0
    %655 = vmatpush1.msra.mxu0 0.0
    %656 = vmatprep.subr.mxu0 0.0
    %657 = vmatpush1.msra.mxu0 0.0
    %658 = vmatprep.subr.mxu0 0.0
    %659 = vmatpush1.msra.mxu0 0.0
    %660 = vmatprep.subr.mxu0 0.0
    %661 = vmatpush1.msra.mxu0 0.0
    %662 = vmatprep.subr.mxu0 0.0
    %663 = vmatpush1.msra.mxu0 0.0
    %664 = vmatprep.subr.mxu0 0.0
    %665 = vmatpush1.msra.mxu0 0.0
    %666 = vmatprep.subr.mxu0 0.0
    %667 = vmatpush1.msra.mxu0 0.0
    %668 = vmatprep.subr.mxu0 0.0
    %669 = vmatpush1.msra.mxu0 0.0
    %670 = vmatprep.subr.mxu0 0.0
    %671 = vmatpush1.msra.mxu0 0.0
    %672 = vmatprep.subr.mxu0 0.0
    %673 = vmatpush1.msra.mxu0 0.0
    %674 = vmatprep.subr.mxu0 0.0
    %675 = vmatpush1.msra.mxu0 0.0
    %676 = vmatprep.subr.mxu0 0.0
    %677 = vmatpush1.msra.mxu0 0.0
    %678 = vmatprep.subr.mxu0 0.0
    %679 = vmatpush1.msra.mxu0 0.0
    %680 = vmatprep.subr.mxu0 0.0
    %681 = vmatpush1.msra.mxu0 0.0
    %682 = vmatprep.subr.mxu0 0.0
    %683 = vmatpush1.msra.mxu0 0.0
    %684 = vmatprep.subr.mxu0 0.0
    %685 = vmatpush1.msra.mxu0 0.0
    %686 = vmatprep.mubr.f32.mxu0 0.0
    %687 = vmatmul.mubr.f32.gmra.mrb[0].mxu0 %v620
    %v688 = vpop.f32.mrb[0].mxu0
    %v689 = vadd.f32 0.0, %v688
    %v690 = vpop.f32.mrb[0].mxu0
    %691 = vdwg.mxu0
    %v692 = vadd.f32 %v616, %v689
    %v693 = vxor.u32 %v692, 2147483648
    %v694 = vmul.f32 %v693, 1.442695
    %v695 = vpow.pop %v694
    %v696 = vadd.f32 %v695, 1.0
    %v697 = vrcp.pop %v696
    %v698 = vmul.f32 1.0, %v697
    %v699 = vadd.f32 %v689, %v282
    %701 = vrot.lane.b32.xlu0 %v699, 64
    %v702 = vpop.permute.xlu0 %701
    %v704 = vmul.f32 %v698, %v702
    %706 = vrot.lane.b32.xlu0 %v704, 64
    %v707 = vpop.permute.xlu0 %706
    %v709 = vadd.f32 %v616, %v707
    %v710 = vtanh.pop %v709
    %v711 = vsub.f32 1.0, %v698
    %713 = vrot.lane.b32.xlu0 %v710, 96
    %v714 = vpop.permute.xlu0 %713
    %v716 = vmul.f32 %v711, %v714
    %v717 = vmul.f32 %v698, %v615
    %v718 = vadd.f32 %v716, %v717
    %v719 = vld [vmem:[#allocation2 + $0x28] sm:$0xff]
    %721 = vrot.lane.b32.xlu0 %v718, 96
    %v722 = vpop.permute.xlu0 %721
    %v723 = vsel %vm199, %v722, 0
    %725 = vmatprep.subr.mxu0 0.0
    %726 = vmatpush1.msra.mxu0 %v183
    %727 = vmatprep.subr.mxu0 0.0
    %728 = vmatpush1.msra.mxu0 %v184
    %729 = vmatprep.subr.mxu0 0.0
    %730 = vmatpush1.msra.mxu0 %v185
    %731 = vmatprep.subr.mxu0 0.0
    %732 = vmatpush1.msra.mxu0 %v186
    %733 = vmatprep.subr.mxu0 0.0
    %734 = vmatpush1.msra.mxu0 0.0
    %735 = vmatprep.subr.mxu0 0.0
    %736 = vmatpush1.msra.mxu0 0.0
    %737 = vmatprep.subr.mxu0 0.0
    %738 = vmatpush1.msra.mxu0 0.0
    %739 = vmatprep.subr.mxu0 0.0
    %740 = vmatpush1.msra.mxu0 0.0
    %741 = vmatprep.subr.mxu0 0.0
    %742 = vmatpush1.msra.mxu0 0.0
    %743 = vmatprep.subr.mxu0 0.0
    %744 = vmatpush1.msra.mxu0 0.0
    %745 = vmatprep.subr.mxu0 0.0
    %746 = vmatpush1.msra.mxu0 0.0
    %747 = vmatprep.subr.mxu0 0.0
    %748 = vmatpush1.msra.mxu0 0.0
    %749 = vmatprep.subr.mxu0 0.0
    %750 = vmatpush1.msra.mxu0 0.0
    %751 = vmatprep.subr.mxu0 0.0
    %752 = vmatpush1.msra.mxu0 0.0
    %753 = vmatprep.subr.mxu0 0.0
    %754 = vmatpush1.msra.mxu0 0.0
    %755 = vmatprep.subr.mxu0 0.0
    %756 = vmatpush1.msra.mxu0 0.0
    %757 = vmatprep.subr.mxu0 0.0
    %758 = vmatpush1.msra.mxu0 0.0
    %759 = vmatprep.subr.mxu0 0.0
    %760 = vmatpush1.msra.mxu0 0.0
    %761 = vmatprep.subr.mxu0 0.0
    %762 = vmatpush1.msra.mxu0 0.0
    %763 = vmatprep.subr.mxu0 0.0
    %764 = vmatpush1.msra.mxu0 0.0
    %765 = vmatprep.subr.mxu0 0.0
    %766 = vmatpush1.msra.mxu0 0.0
    %767 = vmatprep.subr.mxu0 0.0
    %768 = vmatpush1.msra.mxu0 0.0
    %769 = vmatprep.subr.mxu0 0.0
    %770 = vmatpush1.msra.mxu0 0.0
    %771 = vmatprep.subr.mxu0 0.0
    %772 = vmatpush1.msra.mxu0 0.0
    %773 = vmatprep.subr.mxu0 0.0
    %774 = vmatpush1.msra.mxu0 0.0
    %775 = vmatprep.subr.mxu0 0.0
    %776 = vmatpush1.msra.mxu0 0.0
    %777 = vmatprep.subr.mxu0 0.0
    %778 = vmatpush1.msra.mxu0 0.0
    %779 = vmatprep.subr.mxu0 0.0
    %780 = vmatpush1.msra.mxu0 0.0
    %781 = vmatprep.subr.mxu0 0.0
    %782 = vmatpush1.msra.mxu0 0.0
    %783 = vmatprep.subr.mxu0 0.0
    %784 = vmatpush1.msra.mxu0 0.0
    %785 = vmatprep.subr.mxu0 0.0
    %786 = vmatpush1.msra.mxu0 0.0
    %787 = vmatprep.subr.mxu0 0.0
    %788 = vmatpush1.msra.mxu0 0.0
    %789 = vmatprep.mubr.f32.mxu0 0.0
    %790 = vmatmul.mubr.f32.gmra.mrb[0].mxu0 %v723
    %v791 = vpop.f32.mrb[0].mxu0
    %v792 = vadd.f32 0.0, %v791
    %v793 = vpop.f32.mrb[0].mxu0
    %794 = vdwg.mxu0
    %v795 = vadd.f32 %v719, %v792
    %v796 = vxor.u32 %v795, 2147483648
    %v797 = vmul.f32 %v796, 1.442695
    %v798 = vpow.pop %v797
    %v799 = vadd.f32 %v798, 1.0
    %v800 = vrcp.pop %v799
    %v801 = vmul.f32 1.0, %v800
    %v802 = vadd.f32 %v792, %v282
    %804 = vrot.lane.b32.xlu0 %v802, 64
    %v805 = vpop.permute.xlu0 %804
    %v807 = vmul.f32 %v801, %v805
    %809 = vrot.lane.b32.xlu0 %v807, 64
    %v810 = vpop.permute.xlu0 %809
    %v812 = vadd.f32 %v719, %v810
    %v813 = vtanh.pop %v812
    %v814 = vsub.f32 1.0, %v801
    %816 = vrot.lane.b32.xlu0 %v813, 96
    %v817 = vpop.permute.xlu0 %816
    %v819 = vmul.f32 %v814, %v817
    %v820 = vmul.f32 %v801, %v718
    %v821 = vadd.f32 %v819, %v820
    %v822 = vld [vmem:[#allocation2 + $0x30] sm:$0xff]
    %824 = vrot.lane.b32.xlu0 %v821, 96
    %v825 = vpop.permute.xlu0 %824
    %v826 = vsel %vm199, %v825, 0
    %828 = vmatprep.subr.mxu0 0.0
    %829 = vmatpush1.msra.mxu0 %v183
    %830 = vmatprep.subr.mxu0 0.0
    %831 = vmatpush1.msra.mxu0 %v184
    %832 = vmatprep.subr.mxu0 0.0
    %833 = vmatpush1.msra.mxu0 %v185
    %834 = vmatprep.subr.mxu0 0.0
    %835 = vmatpush1.msra.mxu0 %v186
    %836 = vmatprep.subr.mxu0 0.0
    %837 = vmatpush1.msra.mxu0 0.0
    %838 = vmatprep.subr.mxu0 0.0
    %839 = vmatpush1.msra.mxu0 0.0
    %840 = vmatprep.subr.mxu0 0.0
    %841 = vmatpush1.msra.mxu0 0.0
    %842 = vmatprep.subr.mxu0 0.0
    %843 = vmatpush1.msra.mxu0 0.0
    %844 = vmatprep.subr.mxu0 0.0
    %845 = vmatpush1.msra.mxu0 0.0
    %846 = vmatprep.subr.mxu0 0.0
    %847 = vmatpush1.msra.mxu0 0.0
    %848 = vmatprep.subr.mxu0 0.0
    %849 = vmatpush1.msra.mxu0 0.0
    %850 = vmatprep.subr.mxu0 0.0
    %851 = vmatpush1.msra.mxu0 0.0
    %852 = vmatprep.subr.mxu0 0.0
    %853 = vmatpush1.msra.mxu0 0.0
    %854 = vmatprep.subr.mxu0 0.0
    %855 = vmatpush1.msra.mxu0 0.0
    %856 = vmatprep.subr.mxu0 0.0
    %857 = vmatpush1.msra.mxu0 0.0
    %858 = vmatprep.subr.mxu0 0.0
    %859 = vmatpush1.msra.mxu0 0.0
    %860 = vmatprep.subr.mxu0 0.0
    %861 = vmatpush1.msra.mxu0 0.0
    %862 = vmatprep.subr.mxu0 0.0
    %863 = vmatpush1.msra.mxu0 0.0
    %864 = vmatprep.subr.mxu0 0.0
    %865 = vmatpush1.msra.mxu0 0.0
    %866 = vmatprep.subr.mxu0 0.0
    %867 = vmatpush1.msra.mxu0 0.0
    %868 = vmatprep.subr.mxu0 0.0
    %869 = vmatpush1.msra.mxu0 0.0
    %870 = vmatprep.subr.mxu0 0.0
    %871 = vmatpush1.msra.mxu0 0.0
    %872 = vmatprep.subr.mxu0 0.0
    %873 = vmatpush1.msra.mxu0 0.0
    %874 = vmatprep.subr.mxu0 0.0
    %875 = vmatpush1.msra.mxu0 0.0
    %876 = vmatprep.subr.mxu0 0.0
    %877 = vmatpush1.msra.mxu0 0.0
    %878 = vmatprep.subr.mxu0 0.0
    %879 = vmatpush1.msra.mxu0 0.0
    %880 = vmatprep.subr.mxu0 0.0
    %881 = vmatpush1.msra.mxu0 0.0
    %882 = vmatprep.subr.mxu0 0.0
    %883 = vmatpush1.msra.mxu0 0.0
    %884 = vmatprep.subr.mxu0 0.0
    %885 = vmatpush1.msra.mxu0 0.0
    %886 = vmatprep.subr.mxu0 0.0
    %887 = vmatpush1.msra.mxu0 0.0
    %888 = vmatprep.subr.mxu0 0.0
    %889 = vmatpush1.msra.mxu0 0.0
    %890 = vmatprep.subr.mxu0 0.0
    %891 = vmatpush1.msra.mxu0 0.0
    %892 = vmatprep.mubr.f32.mxu0 0.0
    %893 = vmatmul.mubr.f32.gmra.mrb[0].mxu0 %v826
    %v894 = vpop.f32.mrb[0].mxu0
    %v895 = vadd.f32 0.0, %v894
    %v896 = vpop.f32.mrb[0].mxu0
    %897 = vdwg.mxu0
    %v898 = vadd.f32 %v822, %v895
    %v899 = vxor.u32 %v898, 2147483648
    %v900 = vmul.f32 %v899, 1.442695
    %v901 = vpow.pop %v900
    %v902 = vadd.f32 %v901, 1.0
    %v903 = vrcp.pop %v902
    %v904 = vmul.f32 1.0, %v903
    %v905 = vadd.f32 %v895, %v282
    %907 = vrot.lane.b32.xlu0 %v905, 64
    %v908 = vpop.permute.xlu0 %907
    %v910 = vmul.f32 %v904, %v908
    %912 = vrot.lane.b32.xlu0 %v910, 64
    %v913 = vpop.permute.xlu0 %912
    %v915 = vadd.f32 %v822, %v913
    %v916 = vtanh.pop %v915
    %v917 = vsub.f32 1.0, %v904
    %919 = vrot.lane.b32.xlu0 %v916, 96
    %v920 = vpop.permute.xlu0 %919
    %v922 = vmul.f32 %v917, %v920
    %v923 = vmul.f32 %v904, %v821
    %v924 = vadd.f32 %v922, %v923
    %v925 = vld [vmem:[#allocation2 + $0x38] sm:$0xff]
    %927 = vrot.lane.b32.xlu0 %v924, 96
    %v928 = vpop.permute.xlu0 %927
    %v929 = vsel %vm199, %v928, 0
    %931 = vmatprep.subr.mxu0 0.0
    %932 = vmatpush1.msra.mxu0 %v183
    %933 = vmatprep.subr.mxu0 0.0
    %934 = vmatpush1.msra.mxu0 %v184
    %935 = vmatprep.subr.mxu0 0.0
    %936 = vmatpush1.msra.mxu0 %v185
    %937 = vmatprep.subr.mxu0 0.0
    %938 = vmatpush1.msra.mxu0 %v186
    %939 = vmatprep.subr.mxu0 0.0
    %940 = vmatpush1.msra.mxu0 0.0
    %941 = vmatprep.subr.mxu0 0.0
    %942 = vmatpush1.msra.mxu0 0.0
    %943 = vmatprep.subr.mxu0 0.0
    %944 = vmatpush1.msra.mxu0 0.0
    %945 = vmatprep.subr.mxu0 0.0
    %946 = vmatpush1.msra.mxu0 0.0
    %947 = vmatprep.subr.mxu0 0.0
    %948 = vmatpush1.msra.mxu0 0.0
    %949 = vmatprep.subr.mxu0 0.0
    %950 = vmatpush1.msra.mxu0 0.0
    %951 = vmatprep.subr.mxu0 0.0
    %952 = vmatpush1.msra.mxu0 0.0
    %953 = vmatprep.subr.mxu0 0.0
    %954 = vmatpush1.msra.mxu0 0.0
    %955 = vmatprep.subr.mxu0 0.0
    %956 = vmatpush1.msra.mxu0 0.0
    %957 = vmatprep.subr.mxu0 0.0
    %958 = vmatpush1.msra.mxu0 0.0
    %959 = vmatprep.subr.mxu0 0.0
    %960 = vmatpush1.msra.mxu0 0.0
    %961 = vmatprep.subr.mxu0 0.0
    %962 = vmatpush1.msra.mxu0 0.0
    %963 = vmatprep.subr.mxu0 0.0
    %964 = vmatpush1.msra.mxu0 0.0
    %965 = vmatprep.subr.mxu0 0.0
    %966 = vmatpush1.msra.mxu0 0.0
    %967 = vmatprep.subr.mxu0 0.0
    %968 = vmatpush1.msra.mxu0 0.0
    %969 = vmatprep.subr.mxu0 0.0
    %970 = vmatpush1.msra.mxu0 0.0
    %971 = vmatprep.subr.mxu0 0.0
    %972 = vmatpush1.msra.mxu0 0.0
    %973 = vmatprep.subr.mxu0 0.0
    %974 = vmatpush1.msra.mxu0 0.0
    %975 = vmatprep.subr.mxu0 0.0
    %976 = vmatpush1.msra.mxu0 0.0
    %977 = vmatprep.subr.mxu0 0.0
    %978 = vmatpush1.msra.mxu0 0.0
    %979 = vmatprep.subr.mxu0 0.0
    %980 = vmatpush1.msra.mxu0 0.0
    %981 = vmatprep.subr.mxu0 0.0
    %982 = vmatpush1.msra.mxu0 0.0
    %983 = vmatprep.subr.mxu0 0.0
    %984 = vmatpush1.msra.mxu0 0.0
    %985 = vmatprep.subr.mxu0 0.0
    %986 = vmatpush1.msra.mxu0 0.0
    %987 = vmatprep.subr.mxu0 0.0
    %988 = vmatpush1.msra.mxu0 0.0
    %989 = vmatprep.subr.mxu0 0.0
    %990 = vmatpush1.msra.mxu0 0.0
    %991 = vmatprep.subr.mxu0 0.0
    %992 = vmatpush1.msra.mxu0 0.0
    %993 = vmatprep.subr.mxu0 0.0
    %994 = vmatpush1.msra.mxu0 0.0
    %995 = vmatprep.mubr.f32.mxu0 0.0
    %996 = vmatmul.mubr.f32.gmra.mrb[0].mxu0 %v929
    %v997 = vpop.f32.mrb[0].mxu0
    %v998 = vadd.f32 0.0, %v997
    %v999 = vpop.f32.mrb[0].mxu0
    %1000 = vdwg.mxu0
    %v1001 = vadd.f32 %v925, %v998
    %v1002 = vxor.u32 %v1001, 2147483648
    %v1003 = vmul.f32 %v1002, 1.442695
    %v1004 = vpow.pop %v1003
    %v1005 = vadd.f32 %v1004, 1.0
    %v1006 = vrcp.pop %v1005
    %v1007 = vmul.f32 1.0, %v1006
    %v1008 = vadd.f32 %v998, %v282
    %1010 = vrot.lane.b32.xlu0 %v1008, 64
    %v1011 = vpop.permute.xlu0 %1010
    %v1013 = vmul.f32 %v1007, %v1011
    %1015 = vrot.lane.b32.xlu0 %v1013, 64
    %v1016 = vpop.permute.xlu0 %1015
    %v1018 = vadd.f32 %v925, %v1016
    %v1019 = vtanh.pop %v1018
    %v1020 = vsub.f32 1.0, %v1007
    %1022 = vrot.lane.b32.xlu0 %v1019, 96
    %v1023 = vpop.permute.xlu0 %1022
    %v1025 = vmul.f32 %v1020, %v1023
    %v1026 = vmul.f32 %v1007, %v924
    %v1027 = vadd.f32 %v1025, %v1026
    %1029 = vrot.lane.b32.xlu0 %v196, 32
    %v1030 = vpop.permute.xlu0 %1029
    %v1032 = vmul.f32 %v1027, %v1030
    %1034 = vrot.lane.b32.xlu0 %v1032, 96
    %v1035 = vpop.permute.xlu0 %1034
    %v1037 = vsel %vm199, %v1035, 0.0
    %1038 = vadd.xlane.f32.xlu0 %v1037
    %v1039 = vpop.xlane.xlu0 %1038
    %s1040 = sld [smem:[#allocation3]]
    %v1041 = vstv %s1040
    %v1042 = vadd.f32 %v1039, %v1041
    %s1043 = sld [smem:[#allocation3 + $0x1]]
    %vm1044 = vcmp.ge.f32.partialorder %v1042, 0.0
    %v1045 = vstv %s1043
    %v1046 = vmul.f32 %v1045, %v1042
    %v1047 = vsel %vm1044, %v1042, %v1046
    %1048 = vst [vmem:[#allocation6] sm:$0xff] %v1047
    // Predicated region
    $region22: #{tpu_custom_call.1} parent=1 // pred_check
      _
    $region23: #{tpu_custom_call.1} parent=1 // pred_check_branch
      %1050 = sbr.rel (0) target = $region25
    $region24: #{tpu_custom_call.1} parent=1 // pred_region
      %s1052 = ssub.s32 128, 128
      %1053 = vsyncadd [#allocation4], %s1052
      %s1055 = sshll.u32 [#allocation6], 4
      %s1056 = int_to_ptr.vmem [resolvable:$true] %s1055
      %1058 = dma.vmem_to_hbm [thread:$0]  %s1056, 128, %s4, [#allocation4]
    $region25: #{tpu_custom_call.1} parent=1 // pred_fallthru
      _
    // Predicated region
    $region26: #{tpu_custom_call.1} parent=1 // pred_check
      _
    $region27: #{tpu_custom_call.1} parent=1 // pred_check_branch
      %1060 = sbr.rel (0) target = $region29
    $region28: #{tpu_custom_call.1} parent=1 // pred_region
      %1061 = dma.done [#allocation4], 128
    $region29: #{tpu_custom_call.1} parent=1 // pred_fallthru
      _
    %1062 = vsyncpa [#allocation4], 1
    %1063 = vsyncpa [#allocation5], 1

</llo_original>
